<compile_context>
chip_gen: v7x
topology: tpu7x:2x2x1
jax: 0.10.0
libtpu: 0.0.40
codegen_flags: <defaults>
</compile_context>

<pallas_src>
import functools

import jax
import jax.numpy as jnp
from jax.experimental import pallas as pl
from jax.experimental.pallas import tpu as pltpu

# The PyTorch module multiplies by 3.1415926 * 2 (truncated pi) -- keep it to
# preserve the original forward-pass semantics exactly.
TWO_PI = 3.1415926 * 2.0

HIDDEN = 100          # logical hidden width of the MLP
HID_PAD = 128         # lane-padded hidden width


def _round_up(x, m):
    return ((x + m - 1) // m) * m


def _choose_tile_b(B):
    """Batch tile: multiple of 16 (bf16 sublane packing), prefer 256 rows but
    keep >= 8 grid steps for pipelining / v7x megacore; tiny batches use 16."""
    if B <= 16:
        return 16
    for tb in (256, 128, 64, 32, 16):
        if B >= 8 * tb:
            return tb
    return min(256, _round_up(B, 16))


def _sigmoid(z):
    # tanh form: one EUP transcendental per activation (vs exp + divide).
    return 0.5 * (jnp.tanh(0.5 * z) + 1.0)


# ---------------------------------------------------------------------------
# Kernel: one batch tile of the padded MLP, packed cos|sin output.
#   x:  (TILE_B, D)  bf16         w1: (D, 128) bf16        b1: (1, 128) f32
#   w2: (128, 128) bf16           b2: (1, 128) f32
#   w3: (128, OUT2_PAD) bf16 (cols [0:n_out] and [n_out:2n_out] duplicated)
#   b3: (1, OUT2_PAD) f32
#   out: (TILE_B, OUT2_PAD) f32   lanes [0:n_out]=cos, [n_out:2n_out]=sin
# ---------------------------------------------------------------------------
def _v_rf_kernel(x_ref, w1_ref, b1_ref, w2_ref, b2_ref, w3_ref, b3_ref,
                 out_ref, *, n_out):
    x = x_ref[...]                                              # bf16
    z1 = jnp.dot(x, w1_ref[...],
                 preferred_element_type=jnp.float32) + b1_ref[...]
    h1 = _sigmoid(z1)                                           # f32
    z2 = jnp.dot(h1.astype(jnp.bfloat16), w2_ref[...],
                 preferred_element_type=jnp.float32) + b2_ref[...]
    h2 = _sigmoid(z2)
    z3 = jnp.dot(h2.astype(jnp.bfloat16), w3_ref[...],
                 preferred_element_type=jnp.float32) + b3_ref[...]
    y = _sigmoid(z3) * TWO_PI                                   # (TB, OUT2_PAD)
    lane = jax.lax.broadcasted_iota(jnp.int32, y.shape, 1)
    out_ref[...] = jnp.where(lane < n_out, jnp.cos(y), jnp.sin(y))


# ---------------------------------------------------------------------------
# Parameter init (torch.nn.Linear-style uniform +-1/sqrt(fan_in)), unpadded.
# Weights stored pre-transposed as (in, out) so the kernel computes x @ W.
# ---------------------------------------------------------------------------
def init_params(key, M, N, N_RF, K):
    D = 2 * K * M * N
    n_out = N * N_RF
    dims = [(D, HIDDEN), (HIDDEN, HIDDEN), (HIDDEN, n_out)]
    params = []
    for fan_in, fan_out in dims:
        key, kw, kb = jax.random.split(key, 3)
        bound = 1.0 / jnp.sqrt(fan_in)
        w = jax.random.uniform(kw, (fan_in, fan_out), jnp.float32, -bound, bound)
        b = jax.random.uniform(kb, (1, fan_out), jnp.float32, -bound, bound)
        params += [w, b]
    return tuple(params)


def pad_params(params, D, n_out):
    """Lane-dense, bf16 weights / f32 biases.  Padded *input rows* of w2/w3 are
    zero so sigmoid(0)=0.5 in padded hidden lanes contributes nothing (exact).
    w3/b3 columns are duplicated (cos-arg lanes, sin-arg lanes) so one matmul
    feeds the packed cos|sin output slab."""
    w1, b1, w2, b2, w3, b3 = params
    out2_pad = _round_up(2 * n_out, 128)

    w1p = jnp.zeros((D, HID_PAD), jnp.float32).at[:, :HIDDEN].set(w1)
    b1p = jnp.zeros((1, HID_PAD), jnp.float32).at[:, :HIDDEN].set(b1)
    w2p = jnp.zeros((HID_PAD, HID_PAD), jnp.float32).at[:HIDDEN, :HIDDEN].set(w2)
    b2p = jnp.zeros((1, HID_PAD), jnp.float32).at[:, :HIDDEN].set(b2)
    w3p = (jnp.zeros((HID_PAD, out2_pad), jnp.float32)
           .at[:HIDDEN, :n_out].set(w3)
           .at[:HIDDEN, n_out:2 * n_out].set(w3))
    b3p = (jnp.zeros((1, out2_pad), jnp.float32)
           .at[:, :n_out].set(b3)
           .at[:, n_out:2 * n_out].set(b3))
    return (w1p.astype(jnp.bfloat16), b1p,
            w2p.astype(jnp.bfloat16), b2p,
            w3p.astype(jnp.bfloat16), b3p)


def _mosaic_params(tile_b, D, out2_pad):
    # Rough VMEM working set: double-buffered bf16 x tile + resident bf16
    # weights + double-buffered f32 packed output (+ f32 biases).
    est = (2 * tile_b * D * 2
           + 2 * (D * HID_PAD + HID_PAD * HID_PAD + HID_PAD * out2_pad) * 2
           + 2 * (2 * HID_PAD + out2_pad) * 4
           + 2 * tile_b * out2_pad * 4)
    kwargs = dict(dimension_semantics=("parallel",))
    if est > 12 * 1024 * 1024:   # beyond v5e's 16 MiB scoped default (headroom)
        kwargs["vmem_limit_bytes"] = min(2 * est, 64 * 1024 * 1024)
    return pltpu.CompilerParams(**kwargs)


# ---------------------------------------------------------------------------
# Batched forward: H_batch (B, K, 2, M, N) -> (B, 2, N, N_RF)
# ---------------------------------------------------------------------------
def v_rf_layer_forward_batched(H_batch, padded_params, N, N_RF):
    B = H_batch.shape[0]
    D = int(H_batch[0].size)                     # 2*K*M*N
    n_out = N * N_RF
    out2_pad = _round_up(2 * n_out, 128)
    tile_b = _choose_tile_b(B)
    B_pad = _round_up(B, tile_b)

    # Flatten each sample (== H_temp of the PyTorch loop); bf16 halves x DMA.
    # No D padding: the x BlockSpec last dim equals the full array dim.
    x = H_batch.reshape(B, D).astype(jnp.bfloat16)
    if B_pad != B:
        x = jnp.pad(x, ((0, B_pad - B), (0, 0)))

    w1, b1, w2, b2, w3, b3 = padded_params
    grid = (B_pad // tile_b,)

    packed = pl.pallas_call(
        functools.partial(_v_rf_kernel, n_out=n_out),
        out_shape=jax.ShapeDtypeStruct((B_pad, out2_pad), jnp.float32),
        grid=grid,
        in_specs=[
            pl.BlockSpec((tile_b, D), lambda i: (i, 0)),          # x tile
            pl.BlockSpec((D, HID_PAD), lambda i: (0, 0)),         # w1 (resident)
            pl.BlockSpec((1, HID_PAD), lambda i: (0, 0)),         # b1
            pl.BlockSpec((HID_PAD, HID_PAD), lambda i: (0, 0)),   # w2
            pl.BlockSpec((1, HID_PAD), lambda i: (0, 0)),         # b2
            pl.BlockSpec((HID_PAD, out2_pad), lambda i: (0, 0)),  # w3 (dup cols)
            pl.BlockSpec((1, out2_pad), lambda i: (0, 0)),        # b3
        ],
        out_specs=pl.BlockSpec((tile_b, out2_pad), lambda i: (i, 0)),
        compiler_params=_mosaic_params(tile_b, D, out2_pad),
    )(x, w1, b1, w2, b2, w3, b3)

    cos_o = packed[:B, :n_out].reshape(B, N, N_RF)
    sin_o = packed[:B, n_out:2 * n_out].reshape(B, N, N_RF)
    return jnp.stack([cos_o, sin_o], axis=1)      # (B, 2, N, N_RF)


def v_rf_layer_forward(H, padded_params, N, N_RF):
    """Single-sample forward matching the PyTorch module: H (K,2,M,N) -> (2,N,N_RF)."""
    return v_rf_layer_forward_batched(H[None], padded_params, N, N_RF)[0]


# ---------------------------------------------------------------------------
# Pure-JAX references.
#   * f32 reference (unpadded params): checks flatten order + padding scheme;
#     compared with a loose tolerance because the kernel uses bf16 MXU inputs.
#   * bf16-matched reference: same bf16 matmul inputs / f32 accumulation /
#     tanh-form sigmoid; compared with a tight tolerance.
# ---------------------------------------------------------------------------
def v_rf_layer_reference_f32(H_batch, params, N, N_RF):
    w1, b1, w2, b2, w3, b3 = params
    B = H_batch.shape[0]
    x = H_batch.reshape(B, -1).astype(jnp.float32)
    h1 = jax.nn.sigmoid(x @ w1 + b1)
    h2 = jax.nn.sigmoid(h1 @ w2 + b2)
    y = jax.nn.sigmoid(h2 @ w3 + b3) * TWO_PI
    cos_o = jnp.cos(y).reshape(B, N, N_RF)
    sin_o = jnp.sin(y).reshape(B, N, N_RF)
    return jnp.stack([cos_o, sin_o], axis=1)


def v_rf_layer_reference_bf16(H_batch, params, N, N_RF):
    w1, b1, w2, b2, w3, b3 = params
    B = H_batch.shape[0]
    x = H_batch.reshape(B, -1).astype(jnp.bfloat16)
    z1 = jnp.dot(x, w1.astype(jnp.bfloat16),
                 preferred_element_type=jnp.float32) + b1
    h1 = _sigmoid(z1)
    z2 = jnp.dot(h1.astype(jnp.bfloat16), w2.astype(jnp.bfloat16),
                 preferred_element_type=jnp.float32) + b2
    h2 = _sigmoid(z2)
    z3 = jnp.dot(h2.astype(jnp.bfloat16), w3.astype(jnp.bfloat16),
                 preferred_element_type=jnp.float32) + b3
    y = _sigmoid(z3) * TWO_PI
    cos_o = jnp.cos(y).reshape(B, N, N_RF)
    sin_o = jnp.sin(y).reshape(B, N, N_RF)
    return jnp.stack([cos_o, sin_o], axis=1)


if __name__ == "__main__":
    # Small shapes consistent with the module: K users, M x N channel, N_RF chains.
    M, N, N_RF, K = 4, 8, 4, 2            # D = 2*K*M*N = 128, n_out = 32
    B = 256                               # batched channel realizations

    key = jax.random.PRNGKey(0)
    key, kh, khb = jax.random.split(key, 3)
    H_single = jax.random.normal(kh, (K, 2, M, N), dtype=jnp.float32)
    H_batch = jax.random.normal(khb, (B, K, 2, M, N), dtype=jnp.float32)

    params = init_params(key, M, N, N_RF, K)
    padded = pad_params(params, D=2 * K * M * N, n_out=N * N_RF)

    # Single-sample path (exact PyTorch module semantics, small 16-row tile).
    out1 = v_rf_layer_forward(H_single, padded, N, N_RF)
    out1 = jax.block_until_ready(out1)
    assert out1.shape == (2, N, N_RF)
    ref1_bf16 = v_rf_layer_reference_bf16(H_single[None], params, N, N_RF)[0]
    ref1_f32 = v_rf_layer_reference_f32(H_single[None], params, N, N_RF)[0]
    assert jnp.allclose(out1, ref1_bf16, atol=2e-3, rtol=0.0)
    assert jnp.allclose(out1, ref1_f32, atol=2e-2, rtol=0.0)

    # Batched path (the perf-oriented entry point).
    outB = v_rf_layer_forward_batched(H_batch, padded, N, N_RF)
    outB = jax.block_until_ready(outB)
    assert outB.shape == (B, 2, N, N_RF)
    refB_bf16 = v_rf_layer_reference_bf16(H_batch, params, N, N_RF)
    refB_f32 = v_rf_layer_reference_f32(H_batch, params, N, N_RF)
    assert jnp.allclose(outB, refB_bf16, atol=2e-3, rtol=0.0)
    assert jnp.allclose(outB, refB_f32, atol=2e-2, rtol=0.0)

    print("KERNEL_OK")
</pallas_src>

<mosaic_0001>
module attributes {stable_mosaic.version = 11 : i64} {
  func.func @_v_rf_kernel(%arg0: i32, %arg1: memref<16x128xbf16, #tpu.memory_space<vmem>>, %arg2: memref<128x128xbf16, #tpu.memory_space<vmem>>, %arg3: memref<1x128xf32, #tpu.memory_space<vmem>>, %arg4: memref<128x128xbf16, #tpu.memory_space<vmem>>, %arg5: memref<1x128xf32, #tpu.memory_space<vmem>>, %arg6: memref<128x128xbf16, #tpu.memory_space<vmem>>, %arg7: memref<1x128xf32, #tpu.memory_space<vmem>>, %arg8: memref<16x128xf32, #tpu.memory_space<vmem>>) attributes {dimension_semantics = [#tpu.dimension_semantics<parallel>], iteration_bounds = array<i64: 1>, scalar_prefetch = 0 : i64, scratch_operands = 0 : i64, tpu.core_type = #tpu.core_type<tc>, window_params = [{transform_indices = @transform_0, window_bounds = array<i64: 16, 128>}, {pipeline_mode = #tpu.pipeline_mode<synchronous>, transform_indices = @transform_1, window_bounds = array<i64: 128, 128>}, {pipeline_mode = #tpu.pipeline_mode<synchronous>, transform_indices = @transform_2, window_bounds = array<i64: 1, 128>}, {pipeline_mode = #tpu.pipeline_mode<synchronous>, transform_indices = @transform_3, window_bounds = array<i64: 128, 128>}, {pipeline_mode = #tpu.pipeline_mode<synchronous>, transform_indices = @transform_4, window_bounds = array<i64: 1, 128>}, {pipeline_mode = #tpu.pipeline_mode<synchronous>, transform_indices = @transform_5, window_bounds = array<i64: 128, 128>}, {pipeline_mode = #tpu.pipeline_mode<synchronous>, transform_indices = @transform_6, window_bounds = array<i64: 1, 128>}, {transform_indices = @transform_7, window_bounds = array<i64: 16, 128>}]} {
    %c0 = arith.constant 0 : index
    %c0_0 = arith.constant 0 : index
    %0 = vector.load %arg1[%c0, %c0_0] : memref<16x128xbf16, #tpu.memory_space<vmem>>, vector<16x128xbf16>
    %c0_1 = arith.constant 0 : index
    %c0_2 = arith.constant 0 : index
    %1 = vector.load %arg2[%c0_1, %c0_2] : memref<128x128xbf16, #tpu.memory_space<vmem>>, vector<128x128xbf16>
    %cst = arith.constant dense<0.000000e+00> : vector<16x128xf32>
    %2 = tpu.matmul %0, %1, %cst {dimension_numbers = #tpu.dot_dimension_numbers<[1], [0], [0], [1], [0, 0, 1, 1], [], []>} : vector<16x128xbf16>, vector<128x128xbf16>, vector<16x128xf32> -> vector<16x128xf32>
    %c0_3 = arith.constant 0 : index
    %c0_4 = arith.constant 0 : index
    %3 = vector.load %arg3[%c0_3, %c0_4] : memref<1x128xf32, #tpu.memory_space<vmem>>, vector<1x128xf32>
    %4 = vector.broadcast %3 : vector<1x128xf32> to vector<16x128xf32>
    %5 = arith.addf %2, %4 : vector<16x128xf32>
    %cst_5 = arith.constant 5.000000e-01 : f32
    %6 = vector.broadcast %cst_5 : f32 to vector<16x128xf32>
    %7 = arith.mulf %6, %5 : vector<16x128xf32>
    %8 = math.tanh %7 : vector<16x128xf32>
    %cst_6 = arith.constant 1.000000e+00 : f32
    %9 = vector.broadcast %cst_6 : f32 to vector<16x128xf32>
    %10 = arith.addf %8, %9 : vector<16x128xf32>
    %cst_7 = arith.constant 5.000000e-01 : f32
    %11 = vector.broadcast %cst_7 : f32 to vector<16x128xf32>
    %12 = arith.mulf %11, %10 : vector<16x128xf32>
    %13 = arith.truncf %12 : vector<16x128xf32> to vector<16x128xbf16>
    %c0_8 = arith.constant 0 : index
    %c0_9 = arith.constant 0 : index
    %14 = vector.load %arg4[%c0_8, %c0_9] : memref<128x128xbf16, #tpu.memory_space<vmem>>, vector<128x128xbf16>
    %cst_10 = arith.constant dense<0.000000e+00> : vector<16x128xf32>
    %15 = tpu.matmul %13, %14, %cst_10 {dimension_numbers = #tpu.dot_dimension_numbers<[1], [0], [0], [1], [0, 0, 1, 1], [], []>} : vector<16x128xbf16>, vector<128x128xbf16>, vector<16x128xf32> -> vector<16x128xf32>
    %c0_11 = arith.constant 0 : index
    %c0_12 = arith.constant 0 : index
    %16 = vector.load %arg5[%c0_11, %c0_12] : memref<1x128xf32, #tpu.memory_space<vmem>>, vector<1x128xf32>
    %17 = vector.broadcast %16 : vector<1x128xf32> to vector<16x128xf32>
    %18 = arith.addf %15, %17 : vector<16x128xf32>
    %cst_13 = arith.constant 5.000000e-01 : f32
    %19 = vector.broadcast %cst_13 : f32 to vector<16x128xf32>
    %20 = arith.mulf %19, %18 : vector<16x128xf32>
    %21 = math.tanh %20 : vector<16x128xf32>
    %cst_14 = arith.constant 1.000000e+00 : f32
    %22 = vector.broadcast %cst_14 : f32 to vector<16x128xf32>
    %23 = arith.addf %21, %22 : vector<16x128xf32>
    %cst_15 = arith.constant 5.000000e-01 : f32
    %24 = vector.broadcast %cst_15 : f32 to vector<16x128xf32>
    %25 = arith.mulf %24, %23 : vector<16x128xf32>
    %26 = arith.truncf %25 : vector<16x128xf32> to vector<16x128xbf16>
    %c0_16 = arith.constant 0 : index
    %c0_17 = arith.constant 0 : index
    %27 = vector.load %arg6[%c0_16, %c0_17] : memref<128x128xbf16, #tpu.memory_space<vmem>>, vector<128x128xbf16>
    %cst_18 = arith.constant dense<0.000000e+00> : vector<16x128xf32>
    %28 = tpu.matmul %26, %27, %cst_18 {dimension_numbers = #tpu.dot_dimension_numbers<[1], [0], [0], [1], [0, 0, 1, 1], [], []>} : vector<16x128xbf16>, vector<128x128xbf16>, vector<16x128xf32> -> vector<16x128xf32>
    %c0_19 = arith.constant 0 : index
    %c0_20 = arith.constant 0 : index
    %29 = vector.load %arg7[%c0_19, %c0_20] : memref<1x128xf32, #tpu.memory_space<vmem>>, vector<1x128xf32>
    %30 = vector.broadcast %29 : vector<1x128xf32> to vector<16x128xf32>
    %31 = arith.addf %28, %30 : vector<16x128xf32>
    %cst_21 = arith.constant 5.000000e-01 : f32
    %32 = vector.broadcast %cst_21 : f32 to vector<16x128xf32>
    %33 = arith.mulf %32, %31 : vector<16x128xf32>
    %34 = math.tanh %33 : vector<16x128xf32>
    %cst_22 = arith.constant 1.000000e+00 : f32
    %35 = vector.broadcast %cst_22 : f32 to vector<16x128xf32>
    %36 = arith.addf %34, %35 : vector<16x128xf32>
    %cst_23 = arith.constant 5.000000e-01 : f32
    %37 = vector.broadcast %cst_23 : f32 to vector<16x128xf32>
    %38 = arith.mulf %37, %36 : vector<16x128xf32>
    %cst_24 = arith.constant 6.283185 : f32
    %39 = vector.broadcast %cst_24 : f32 to vector<16x128xf32>
    %40 = arith.mulf %38, %39 : vector<16x128xf32>
    %41 = tpu.iota {dimensions = array<i32: 1>} : vector<16x128xi32>
    %c32_i32 = arith.constant 32 : i32
    %42 = vector.broadcast %c32_i32 : i32 to vector<16x128xi32>
    %43 = arith.cmpi slt, %41, %42 : vector<16x128xi32>
    %44 = math.cos %40 : vector<16x128xf32>
    %45 = math.sin %40 : vector<16x128xf32>
    %46 = arith.select %43, %44, %45 : vector<16x128xi1>, vector<16x128xf32>
    %c0_25 = arith.constant 0 : index
    %c0_26 = arith.constant 0 : index
    %47 = vector.load %arg8[%c0_25, %c0_26] : memref<16x128xf32, #tpu.memory_space<vmem>>, vector<16x128xf32>
    tpu.vector_store %arg8[%c0_25, %c0_26], %46 {strides = array<i32>} : memref<16x128xf32, #tpu.memory_space<vmem>>, vector<16x128xf32>,
    return
  }
  func.func @transform_0(%arg0: i32) -> (i32, i32) {
    %c0_i32 = arith.constant 0 : i32
    %c0_i32_0 = arith.constant 0 : i32
    return %arg0, %c0_i32 : i32, i32
  }
  func.func @transform_1(%arg0: i32) -> (i32, i32) {
    %c0_i32 = arith.constant 0 : i32
    %c0_i32_0 = arith.constant 0 : i32
    %c0_i32_1 = arith.constant 0 : i32
    return %c0_i32, %c0_i32_0 : i32, i32
  }
  func.func @transform_2(%arg0: i32) -> (i32, i32) {
    %c0_i32 = arith.constant 0 : i32
    %c0_i32_0 = arith.constant 0 : i32
    %c0_i32_1 = arith.constant 0 : i32
    return %c0_i32, %c0_i32_0 : i32, i32
  }
  func.func @transform_3(%arg0: i32) -> (i32, i32) {
    %c0_i32 = arith.constant 0 : i32
    %c0_i32_0 = arith.constant 0 : i32
    %c0_i32_1 = arith.constant 0 : i32
    return %c0_i32, %c0_i32_0 : i32, i32
  }
  func.func @transform_4(%arg0: i32) -> (i32, i32) {
    %c0_i32 = arith.constant 0 : i32
    %c0_i32_0 = arith.constant 0 : i32
    %c0_i32_1 = arith.constant 0 : i32
    return %c0_i32, %c0_i32_0 : i32, i32
  }
  func.func @transform_5(%arg0: i32) -> (i32, i32) {
    %c0_i32 = arith.constant 0 : i32
    %c0_i32_0 = arith.constant 0 : i32
    %c0_i32_1 = arith.constant 0 : i32
    return %c0_i32, %c0_i32_0 : i32, i32
  }
  func.func @transform_6(%arg0: i32) -> (i32, i32) {
    %c0_i32 = arith.constant 0 : i32
    %c0_i32_0 = arith.constant 0 : i32
    %c0_i32_1 = arith.constant 0 : i32
    return %c0_i32, %c0_i32_0 : i32, i32
  }
  func.func @transform_7(%arg0: i32) -> (i32, i32) {
    %c0_i32 = arith.constant 0 : i32
    %c0_i32_0 = arith.constant 0 : i32
    return %arg0, %c0_i32 : i32, i32
  }
}

</mosaic_0001>

<llo_original>
// kernel: tpu_custom_call.1
$region0: #{tpu_custom_call.1}
  #allocation0 [shape = 'u32[]', space=smem, size = 0x4, offset = 0x4, fixed_abs, tag = 'smem constant byte address 0x4 - core index']
  #allocation1 [shape = 'u32[144,128]{1,0:T(1,128)}', space=vmem, size = 0x12000, scoped, tag = 'internal scratch']
  %s0 = inlined_call_operand.hbm [shape: bf16[16,128], index: 0, kind: input, shape index: {}]
  %s1 = inlined_call_operand.hbm [shape: bf16[128,128], index: 1, kind: input, shape index: {}]
  %s2 = inlined_call_operand.vmem [shape: f32[1,128], index: 2, kind: input, shape index: {}]
  %s3 = inlined_call_operand.hbm [shape: bf16[128,128], index: 3, kind: input, shape index: {}]
  %s4 = inlined_call_operand.vmem [shape: f32[1,128], index: 4, kind: input, shape index: {}]
  %s5 = inlined_call_operand.hbm [shape: bf16[128,128], index: 5, kind: input, shape index: {}]
  %s6 = inlined_call_operand.vmem [shape: f32[1,128], index: 6, kind: input, shape index: {}]
  %s7 = inlined_call_operand.hbm [shape: f32[16,128], index: 7, kind: output, shape index: {}]
  %s8 = sld [smem:[#allocation0]]
  $region54: #{tpu_custom_call.1} parent=0
    _
  %s10 = ssub.s32 1, %s8
  %s11 = scalar_select 0, %s10, %s8
  $region1: #{tpu_custom_call.1} parent=0
    #allocation2 [shape = 'u8[4096]{0}', space=vmem, size = 0x1000, scoped, tag = 'input window, operand 0, single buffered']
    #allocation3 [shape = 's32[1]{0}', space=sflag, size = 0x4, scoped, tag = 'scoped memory for tpu_custom_call.1']
    #allocation4 [shape = 's32[1]{0}', space=sflag, size = 0x4, scoped, tag = 'scoped memory for tpu_custom_call.1']
    #allocation5 [shape = 'u8[32768]{0}', space=vmem, size = 0x8000, scoped, tag = 'input window, operand 1, single buffered']
    #allocation6 [shape = 's32[1]{0}', space=sflag, size = 0x4, scoped, tag = 'scoped memory for tpu_custom_call.1']
    #allocation7 [shape = 'u8[32768]{0}', space=vmem, size = 0x8000, scoped, tag = 'input window, operand 3, single buffered']
    #allocation8 [shape = 'u8[32768]{0}', space=vmem, size = 0x8000, scoped, tag = 'input window, operand 5, single buffered']
    #allocation9 [shape = 's32[1]{0}', space=sflag, size = 0x4, scoped, tag = 'scoped memory for tpu_custom_call.1']
    #allocation10 [shape = 'u8[8192]{0}', space=vmem, size = 0x2000, scoped, tag = 'output window, operand 0, single buffered']
    %12 = vsyncpa [#allocation3], 0
    %13 = vsyncpa [#allocation6], 0
    %14 = vsyncpa [#allocation9], 0
    %15 = vsyncpa [#allocation4], 0
    // Predicated region
    $region2: #{tpu_custom_call.1} parent=1 // pred_check
      _
    $region3: #{tpu_custom_call.1} parent=1 // pred_check_branch
      %17 = sbr.rel (0) target = $region5
    $region4: #{tpu_custom_call.1} parent=1 // pred_region
      %s19 = ssub.s32 128, 128
      %20 = vsyncadd [#allocation3], %s19
      %s21 = sshll.u32 [#allocation2], 4
      %s22 = int_to_ptr.vmem [resolvable:$true] %s21
      %27 = dma.hbm_to_vmem [thread:$0]  %s0, 128, %s22, [#allocation3], 64, 64, 4
    $region5: #{tpu_custom_call.1} parent=1 // pred_fallthru
      _
    // Predicated region
    $region6: #{tpu_custom_call.1} parent=1 // pred_check
      _
    $region7: #{tpu_custom_call.1} parent=1 // pred_check_branch
      %29 = sbr.rel (0) target = $region9
    $region8: #{tpu_custom_call.1} parent=1 // pred_region
      %s31 = ssub.s32 1024, 1024
      %32 = vsyncadd [#allocation6], %s31
      %s33 = sshll.u32 [#allocation5], 4
      %s34 = int_to_ptr.vmem [resolvable:$true] %s33
      %39 = dma.hbm_to_vmem [thread:$0]  %s1, 1024, %s34, [#allocation6], 64, 64, 4
    $region9: #{tpu_custom_call.1} parent=1 // pred_fallthru
      _
    // Predicated region
    $region10: #{tpu_custom_call.1} parent=1 // pred_check
      _
    $region11: #{tpu_custom_call.1} parent=1 // pred_check_branch
      %41 = sbr.rel (0) target = $region13
    $region12: #{tpu_custom_call.1} parent=1 // pred_region
      _
    $region13: #{tpu_custom_call.1} parent=1 // pred_fallthru
      _
    // Predicated region
    $region14: #{tpu_custom_call.1} parent=1 // pred_check
      _
    $region15: #{tpu_custom_call.1} parent=1 // pred_check_branch
      %43 = sbr.rel (0) target = $region17
    $region16: #{tpu_custom_call.1} parent=1 // pred_region
      %s45 = ssub.s32 1024, 1024
      %46 = vsyncadd [#allocation6], %s45
      %s47 = sshll.u32 [#allocation7], 4
      %s48 = int_to_ptr.vmem [resolvable:$true] %s47
      %53 = dma.hbm_to_vmem [thread:$0]  %s3, 1024, %s48, [#allocation6], 64, 64, 4
    $region17: #{tpu_custom_call.1} parent=1 // pred_fallthru
      _
    // Predicated region
    $region18: #{tpu_custom_call.1} parent=1 // pred_check
      _
    $region19: #{tpu_custom_call.1} parent=1 // pred_check_branch
      %55 = sbr.rel (0) target = $region21
    $region20: #{tpu_custom_call.1} parent=1 // pred_region
      _
    $region21: #{tpu_custom_call.1} parent=1 // pred_fallthru
      _
    // Predicated region
    $region22: #{tpu_custom_call.1} parent=1 // pred_check
      _
    $region23: #{tpu_custom_call.1} parent=1 // pred_check_branch
      %57 = sbr.rel (0) target = $region25
    $region24: #{tpu_custom_call.1} parent=1 // pred_region
      %s59 = ssub.s32 1024, 1024
      %60 = vsyncadd [#allocation9], %s59
      %s61 = sshll.u32 [#allocation8], 4
      %s62 = int_to_ptr.vmem [resolvable:$true] %s61
      %67 = dma.hbm_to_vmem [thread:$0]  %s5, 1024, %s62, [#allocation9], 64, 64, 4
    $region25: #{tpu_custom_call.1} parent=1 // pred_fallthru
      _
    // Predicated region
    $region26: #{tpu_custom_call.1} parent=1 // pred_check
      _
    $region27: #{tpu_custom_call.1} parent=1 // pred_check_branch
      %69 = sbr.rel (0) target = $region29
    $region28: #{tpu_custom_call.1} parent=1 // pred_region
      _
    $region29: #{tpu_custom_call.1} parent=1 // pred_fallthru
      _
    // Predicated region
    $region30: #{tpu_custom_call.1} parent=1 // pred_check
      _
    $region31: #{tpu_custom_call.1} parent=1 // pred_check_branch
      %71 = sbr.rel (0) target = $region33
    $region32: #{tpu_custom_call.1} parent=1 // pred_region
      %72 = dma.done [#allocation3], 128
    $region33: #{tpu_custom_call.1} parent=1 // pred_fallthru
      _
    // Predicated region
    $region34: #{tpu_custom_call.1} parent=1 // pred_check
      _
    $region35: #{tpu_custom_call.1} parent=1 // pred_check_branch
      %74 = sbr.rel (0) target = $region37
    $region36: #{tpu_custom_call.1} parent=1 // pred_region
      %75 = dma.done [#allocation6], 1024
    $region37: #{tpu_custom_call.1} parent=1 // pred_fallthru
      _
    // Predicated region
    $region38: #{tpu_custom_call.1} parent=1 // pred_check
      _
    $region39: #{tpu_custom_call.1} parent=1 // pred_check_branch
      %77 = sbr.rel (0) target = $region41
    $region40: #{tpu_custom_call.1} parent=1 // pred_region
      %78 = dma.done [#allocation6], 1024
    $region41: #{tpu_custom_call.1} parent=1 // pred_fallthru
      _
    // Predicated region
    $region42: #{tpu_custom_call.1} parent=1 // pred_check
      _
    $region43: #{tpu_custom_call.1} parent=1 // pred_check_branch
      %80 = sbr.rel (0) target = $region45
    $region44: #{tpu_custom_call.1} parent=1 // pred_region
      %81 = dma.done [#allocation9], 1024
    $region45: #{tpu_custom_call.1} parent=1 // pred_fallthru
      _
    %v83 = vld [vmem:[#allocation2] sm:$0xf]
    %v84 = vld [vmem:[#allocation2 + $0x4] sm:$0xf]
    %v85 = vld [vmem:[#allocation5] sm:$0xf]
    %v86 = vld [vmem:[#allocation5 + $0x4] sm:$0xf]
    %v87 = vld [vmem:[#allocation5 + $0x8] sm:$0xf]
    %v88 = vld [vmem:[#allocation5 + $0xc] sm:$0xf]
    %v89 = vld [vmem:[#allocation5 + $0x10] sm:$0xf]
    %v90 = vld [vmem:[#allocation5 + $0x14] sm:$0xf]
    %v91 = vld [vmem:[#allocation5 + $0x18] sm:$0xf]
    %v92 = vld [vmem:[#allocation5 + $0x1c] sm:$0xf]
    %v93 = vld [vmem:[#allocation5 + $0x20] sm:$0xf]
    %v94 = vld [vmem:[#allocation5 + $0x24] sm:$0xf]
    %v95 = vld [vmem:[#allocation5 + $0x28] sm:$0xf]
    %v96 = vld [vmem:[#allocation5 + $0x2c] sm:$0xf]
    %v97 = vld [vmem:[#allocation5 + $0x30] sm:$0xf]
    %v98 = vld [vmem:[#allocation5 + $0x34] sm:$0xf]
    %v99 = vld [vmem:[#allocation5 + $0x38] sm:$0xf]
    %v100 = vld [vmem:[#allocation5 + $0x3c] sm:$0xf]
    %v101 = vld [vmem:[%s2] sm:$0x1]
    %v103 = vlaneseq
    %v104 = vshrl.u32 %v103, 7
    %v105 = vsub.s32 0, %v104
    %v106 = vrot.slane %v101, %v105
    %v110 = vunpack.c.l.b16 %v83
    %v111 = vunpack.c.l.b16 %v84
    %v112 = vpack.c.b16 %v111, %v110
    %v130 = vunpack.c.l.b16 %v85
    %v131 = vunpack.c.l.b16 %v86
    %v132 = vunpack.c.l.b16 %v87
    %v133 = vunpack.c.l.b16 %v88
    %v134 = vunpack.c.l.b16 %v89
    %v135 = vunpack.c.l.b16 %v90
    %v136 = vunpack.c.l.b16 %v91
    %v137 = vunpack.c.l.b16 %v92
    %v138 = vunpack.c.l.b16 %v93
    %v139 = vunpack.c.l.b16 %v94
    %v140 = vunpack.c.l.b16 %v95
    %v141 = vunpack.c.l.b16 %v96
    %v142 = vunpack.c.l.b16 %v97
    %v143 = vunpack.c.l.b16 %v98
    %v144 = vunpack.c.l.b16 %v99
    %v145 = vunpack.c.l.b16 %v100
    %v146 = vpack.c.b16 %v131, %v130
    %v147 = vpack.c.b16 %v133, %v132
    %v148 = vpack.c.b16 %v135, %v134
    %v149 = vpack.c.b16 %v137, %v136
    %v150 = vpack.c.b16 %v139, %v138
    %v151 = vpack.c.b16 %v141, %v140
    %v152 = vpack.c.b16 %v143, %v142
    %v153 = vpack.c.b16 %v145, %v144
    %162 = vmatprep.subr.bf16.mxu0 0
    %163 = vmatpush1.bf16.msra.mxu0 %v146
    %164 = vmatprep.subr.bf16.mxu0 0
    %165 = vmatpush1.bf16.msra.mxu0 %v147
    %166 = vmatprep.subr.bf16.mxu0 0
    %167 = vmatpush1.bf16.msra.mxu0 %v148
    %168 = vmatprep.subr.bf16.mxu0 0
    %169 = vmatpush1.bf16.msra.mxu0 %v149
    %170 = vmatprep.subr.bf16.mxu0 0
    %171 = vmatpush1.bf16.msra.mxu0 %v150
    %172 = vmatprep.subr.bf16.mxu0 0
    %173 = vmatpush1.bf16.msra.mxu0 %v151
    %174 = vmatprep.subr.bf16.mxu0 0
    %175 = vmatpush1.bf16.msra.mxu0 %v152
    %176 = vmatprep.subr.bf16.mxu0 0
    %177 = vmatpush1.bf16.msra.mxu0 %v153
    %178 = vmatprep.subr.bf16.mxu0 0
    %179 = vmatpush1.bf16.msra.mxu0 0
    %180 = vmatprep.subr.bf16.mxu0 0
    %181 = vmatpush1.bf16.msra.mxu0 0
    %182 = vmatprep.subr.bf16.mxu0 0
    %183 = vmatpush1.bf16.msra.mxu0 0
    %184 = vmatprep.subr.bf16.mxu0 0
    %185 = vmatpush1.bf16.msra.mxu0 0
    %186 = vmatprep.subr.bf16.mxu0 0
    %187 = vmatpush1.bf16.msra.mxu0 0
    %188 = vmatprep.subr.bf16.mxu0 0
    %189 = vmatpush1.bf16.msra.mxu0 0
    %190 = vmatprep.subr.bf16.mxu0 0
    %191 = vmatpush1.bf16.msra.mxu0 0
    %192 = vmatprep.subr.bf16.mxu0 0
    %193 = vmatpush1.bf16.msra.mxu0 0
    %194 = vmatprep.mubr.bf16.mxu0 0
    %195 = vmatmul.mubr.bf16.gmra.mrb[0].mxu0 %v112
    %v196 = vpop.f32.mrb[0].mxu0
    %v197 = vadd.f32 %v106, %v196
    %v198 = vpop.f32.mrb[0].mxu0
    %v199 = vpop.f32.mrb[0].mxu0
    %v200 = vadd.f32 %v106, %v199
    %v201 = vpop.f32.mrb[0].mxu0
    %202 = vdwg.mxu0
    %v203 = vmul.f32 %v197, 0.5
    %v204 = vmul.f32 %v200, 0.5
    %v205 = vtanh.pop %v203
    %v206 = vtanh.pop %v204
    %v207 = vadd.f32 %v205, 1.0
    %v208 = vadd.f32 %v206, 1.0
    %v209 = vmul.f32 %v207, 0.5
    %v210 = vmul.f32 %v208, 0.5
    %v211 = vpack.c.bf16 %v210, %v209
    %v212 = vld [vmem:[#allocation7] sm:$0xf]
    %v213 = vld [vmem:[#allocation7 + $0x4] sm:$0xf]
    %v214 = vld [vmem:[#allocation7 + $0x8] sm:$0xf]
    %v215 = vld [vmem:[#allocation7 + $0xc] sm:$0xf]
    %v216 = vld [vmem:[#allocation7 + $0x10] sm:$0xf]
    %v217 = vld [vmem:[#allocation7 + $0x14] sm:$0xf]
    %v218 = vld [vmem:[#allocation7 + $0x18] sm:$0xf]
    %v219 = vld [vmem:[#allocation7 + $0x1c] sm:$0xf]
    %v220 = vld [vmem:[#allocation7 + $0x20] sm:$0xf]
    %v221 = vld [vmem:[#allocation7 + $0x24] sm:$0xf]
    %v222 = vld [vmem:[#allocation7 + $0x28] sm:$0xf]
    %v223 = vld [vmem:[#allocation7 + $0x2c] sm:$0xf]
    %v224 = vld [vmem:[#allocation7 + $0x30] sm:$0xf]
    %v225 = vld [vmem:[#allocation7 + $0x34] sm:$0xf]
    %v226 = vld [vmem:[#allocation7 + $0x38] sm:$0xf]
    %v227 = vld [vmem:[#allocation7 + $0x3c] sm:$0xf]
    %v228 = vld [vmem:[%s4] sm:$0x1]
    %v230 = vlaneseq
    %v231 = vshrl.u32 %v230, 7
    %v232 = vsub.s32 0, %v231
    %v233 = vrot.slane %v228, %v232
    %v251 = vunpack.c.l.b16 %v212
    %v252 = vunpack.c.l.b16 %v213
    %v253 = vunpack.c.l.b16 %v214
    %v254 = vunpack.c.l.b16 %v215
    %v255 = vunpack.c.l.b16 %v216
    %v256 = vunpack.c.l.b16 %v217
    %v257 = vunpack.c.l.b16 %v218
    %v258 = vunpack.c.l.b16 %v219
    %v259 = vunpack.c.l.b16 %v220
    %v260 = vunpack.c.l.b16 %v221
    %v261 = vunpack.c.l.b16 %v222
    %v262 = vunpack.c.l.b16 %v223
    %v263 = vunpack.c.l.b16 %v224
    %v264 = vunpack.c.l.b16 %v225
    %v265 = vunpack.c.l.b16 %v226
    %v266 = vunpack.c.l.b16 %v227
    %v267 = vpack.c.b16 %v252, %v251
    %v268 = vpack.c.b16 %v254, %v253
    %v269 = vpack.c.b16 %v256, %v255
    %v270 = vpack.c.b16 %v258, %v257
    %v271 = vpack.c.b16 %v260, %v259
    %v272 = vpack.c.b16 %v262, %v261
    %v273 = vpack.c.b16 %v264, %v263
    %v274 = vpack.c.b16 %v266, %v265
    %283 = vmatprep.subr.bf16.mxu0 0
    %284 = vmatpush1.bf16.msra.mxu0 %v267
    %285 = vmatprep.subr.bf16.mxu0 0
    %286 = vmatpush1.bf16.msra.mxu0 %v268
    %287 = vmatprep.subr.bf16.mxu0 0
    %288 = vmatpush1.bf16.msra.mxu0 %v269
    %289 = vmatprep.subr.bf16.mxu0 0
    %290 = vmatpush1.bf16.msra.mxu0 %v270
    %291 = vmatprep.subr.bf16.mxu0 0
    %292 = vmatpush1.bf16.msra.mxu0 %v271
    %293 = vmatprep.subr.bf16.mxu0 0
    %294 = vmatpush1.bf16.msra.mxu0 %v272
    %295 = vmatprep.subr.bf16.mxu0 0
    %296 = vmatpush1.bf16.msra.mxu0 %v273
    %297 = vmatprep.subr.bf16.mxu0 0
    %298 = vmatpush1.bf16.msra.mxu0 %v274
    %299 = vmatprep.subr.bf16.mxu0 0
    %300 = vmatpush1.bf16.msra.mxu0 0
    %301 = vmatprep.subr.bf16.mxu0 0
    %302 = vmatpush1.bf16.msra.mxu0 0
    %303 = vmatprep.subr.bf16.mxu0 0
    %304 = vmatpush1.bf16.msra.mxu0 0
    %305 = vmatprep.subr.bf16.mxu0 0
    %306 = vmatpush1.bf16.msra.mxu0 0
    %307 = vmatprep.subr.bf16.mxu0 0
    %308 = vmatpush1.bf16.msra.mxu0 0
    %309 = vmatprep.subr.bf16.mxu0 0
    %310 = vmatpush1.bf16.msra.mxu0 0
    %311 = vmatprep.subr.bf16.mxu0 0
    %312 = vmatpush1.bf16.msra.mxu0 0
    %313 = vmatprep.subr.bf16.mxu0 0
    %314 = vmatpush1.bf16.msra.mxu0 0
    %315 = vmatprep.mubr.bf16.mxu0 0
    %316 = vmatmul.mubr.bf16.gmra.mrb[0].mxu0 %v211
    %v317 = vpop.f32.mrb[0].mxu0
    %v318 = vadd.f32 %v233, %v317
    %v319 = vpop.f32.mrb[0].mxu0
    %v320 = vpop.f32.mrb[0].mxu0
    %v321 = vadd.f32 %v233, %v320
    %v322 = vpop.f32.mrb[0].mxu0
    %323 = vdwg.mxu0
    %v324 = vmul.f32 %v318, 0.5
    %v325 = vmul.f32 %v321, 0.5
    %v326 = vtanh.pop %v324
    %v327 = vtanh.pop %v325
    %v328 = vadd.f32 %v326, 1.0
    %v329 = vadd.f32 %v327, 1.0
    %v330 = vmul.f32 %v328, 0.5
    %v331 = vmul.f32 %v329, 0.5
    %v332 = vpack.c.bf16 %v331, %v330
    %v333 = vld [vmem:[#allocation8] sm:$0xf]
    %v334 = vld [vmem:[#allocation8 + $0x4] sm:$0xf]
    %v335 = vld [vmem:[#allocation8 + $0x8] sm:$0xf]
    %v336 = vld [vmem:[#allocation8 + $0xc] sm:$0xf]
    %v337 = vld [vmem:[#allocation8 + $0x10] sm:$0xf]
    %v338 = vld [vmem:[#allocation8 + $0x14] sm:$0xf]
    %v339 = vld [vmem:[#allocation8 + $0x18] sm:$0xf]
    %v340 = vld [vmem:[#allocation8 + $0x1c] sm:$0xf]
    %v341 = vld [vmem:[#allocation8 + $0x20] sm:$0xf]
    %v342 = vld [vmem:[#allocation8 + $0x24] sm:$0xf]
    %v343 = vld [vmem:[#allocation8 + $0x28] sm:$0xf]
    %v344 = vld [vmem:[#allocation8 + $0x2c] sm:$0xf]
    %v345 = vld [vmem:[#allocation8 + $0x30] sm:$0xf]
    %v346 = vld [vmem:[#allocation8 + $0x34] sm:$0xf]
    %v347 = vld [vmem:[#allocation8 + $0x38] sm:$0xf]
    %v348 = vld [vmem:[#allocation8 + $0x3c] sm:$0xf]
    %v349 = vld [vmem:[%s6] sm:$0x1]
    %v351 = vlaneseq
    %v352 = vshrl.u32 %v351, 7
    %v353 = vsub.s32 0, %v352
    %v354 = vrot.slane %v349, %v353
    %v372 = vunpack.c.l.b16 %v333
    %v373 = vunpack.c.l.b16 %v334
    %v374 = vunpack.c.l.b16 %v335
    %v375 = vunpack.c.l.b16 %v336
    %v376 = vunpack.c.l.b16 %v337
    %v377 = vunpack.c.l.b16 %v338
    %v378 = vunpack.c.l.b16 %v339
    %v379 = vunpack.c.l.b16 %v340
    %v380 = vunpack.c.l.b16 %v341
    %v381 = vunpack.c.l.b16 %v342
    %v382 = vunpack.c.l.b16 %v343
    %v383 = vunpack.c.l.b16 %v344
    %v384 = vunpack.c.l.b16 %v345
    %v385 = vunpack.c.l.b16 %v346
    %v386 = vunpack.c.l.b16 %v347
    %v387 = vunpack.c.l.b16 %v348
    %v388 = vpack.c.b16 %v373, %v372
    %v389 = vpack.c.b16 %v375, %v374
    %v390 = vpack.c.b16 %v377, %v376
    %v391 = vpack.c.b16 %v379, %v378
    %v392 = vpack.c.b16 %v381, %v380
    %v393 = vpack.c.b16 %v383, %v382
    %v394 = vpack.c.b16 %v385, %v384
    %v395 = vpack.c.b16 %v387, %v386
    %404 = vmatprep.subr.bf16.mxu0 0
    %405 = vmatpush1.bf16.msra.mxu0 %v388
    %406 = vmatprep.subr.bf16.mxu0 0
    %407 = vmatpush1.bf16.msra.mxu0 %v389
    %408 = vmatprep.subr.bf16.mxu0 0
    %409 = vmatpush1.bf16.msra.mxu0 %v390
    %410 = vmatprep.subr.bf16.mxu0 0
    %411 = vmatpush1.bf16.msra.mxu0 %v391
    %412 = vmatprep.subr.bf16.mxu0 0
    %413 = vmatpush1.bf16.msra.mxu0 %v392
    %414 = vmatprep.subr.bf16.mxu0 0
    %415 = vmatpush1.bf16.msra.mxu0 %v393
    %416 = vmatprep.subr.bf16.mxu0 0
    %417 = vmatpush1.bf16.msra.mxu0 %v394
    %418 = vmatprep.subr.bf16.mxu0 0
    %419 = vmatpush1.bf16.msra.mxu0 %v395
    %420 = vmatprep.subr.bf16.mxu0 0
    %421 = vmatpush1.bf16.msra.mxu0 0
    %422 = vmatprep.subr.bf16.mxu0 0
    %423 = vmatpush1.bf16.msra.mxu0 0
    %424 = vmatprep.subr.bf16.mxu0 0
    %425 = vmatpush1.bf16.msra.mxu0 0
    %426 = vmatprep.subr.bf16.mxu0 0
    %427 = vmatpush1.bf16.msra.mxu0 0
    %428 = vmatprep.subr.bf16.mxu0 0
    %429 = vmatpush1.bf16.msra.mxu0 0
    %430 = vmatprep.subr.bf16.mxu0 0
    %431 = vmatpush1.bf16.msra.mxu0 0
    %432 = vmatprep.subr.bf16.mxu0 0
    %433 = vmatpush1.bf16.msra.mxu0 0
    %434 = vmatprep.subr.bf16.mxu0 0
    %435 = vmatpush1.bf16.msra.mxu0 0
    %436 = vmatprep.mubr.bf16.mxu0 0
    %437 = vmatmul.mubr.bf16.gmra.mrb[0].mxu0 %v332
    %v438 = vpop.f32.mrb[0].mxu0
    %v439 = vadd.f32 %v354, %v438
    %v440 = vpop.f32.mrb[0].mxu0
    %v441 = vpop.f32.mrb[0].mxu0
    %v442 = vadd.f32 %v354, %v441
    %v443 = vpop.f32.mrb[0].mxu0
    %444 = vdwg.mxu0
    %v445 = vmul.f32 %v439, 0.5
    %v446 = vmul.f32 %v442, 0.5
    %v447 = vtanh.pop %v445
    %v448 = vtanh.pop %v446
    %v449 = vadd.f32 %v447, 1.0
    %v450 = vadd.f32 %v448, 1.0
    %v451 = vmul.f32 %v449, 0.5
    %v452 = vmul.f32 %v450, 0.5
    %v453 = vmul.f32 %v451, 6.283185
    %v454 = vmul.f32 %v452, 6.283185
    %v455 = vlaneseq
    %v456 = vand.u32 %v455, 127
    %vm457 = vcmp.lt.s32.totalorder %v456, 32
    %v458 = vand.u32 2147483647, %v453
    %vm459 = vcmp.le.f32.partialorder %v458, 0.7853982
    %vm460 = vcmp.lt.s32.totalorder %v453, 0
    %v461 = vand.u32 %v453, 2139095040
    %v462 = vshrl.u32 %v461, 23
    %v463 = vsub.s32 %v462, 127
    %v464 = vand.u32 2147483647, %v453
    %v465 = vand.u32 %v464, 8388607
    %v466 = vor.u32 %v465, 8388608
    %v467 = vsub.s32 0, %v466
    %v468 = vadd.s32 %v463, 1
    %vm469 = vcmp.gt.s32.totalorder %v468, 0
    %v470 = vsel %vm469, %v468, 0
    %v471 = vshrl.u32 %v470, 5
    %v472 = vand.u32 %v470, 31
    %v473 = vsub.s32 32, %v472
    %v474 = vshrl.u32 683565275, %v473
    %v475 = vshll.u32 683565275, %v472
    %v476 = vshrl.u32 2475754826, %v473
    %v477 = vor.u32 %v475, %v476
    %v478 = vshll.u32 2475754826, %v472
    %v479 = vshrl.u32 2131351028, %v473
    %v480 = vor.u32 %v478, %v479
    %v481 = vshll.u32 2131351028, %v472
    %v482 = vshrl.u32 2102212464, %v473
    %v483 = vor.u32 %v481, %v482
    %v484 = vshll.u32 2102212464, %v472
    %v485 = vshrl.u32 920167782, %v473
    %v486 = vor.u32 %v484, %v485
    %v487 = vshll.u32 920167782, %v472
    %v488 = vshrl.u32 1326507024, %v473
    %v489 = vor.u32 %v487, %v488
    %vm490 = vcmp.lt.s32.totalorder %v471, 1
    %vm491 = vcmp.lt.s32.totalorder %v471, 2
    %vm492 = vcmp.lt.s32.totalorder %v471, 3
    %vm493 = vcmp.lt.s32.totalorder %v471, 4
    %v494 = vsel %vm490, %v474, %v477
    %v495 = vsel %vm493, %v483, 2102212464
    %v496 = vsel %vm492, %v480, %v495
    %v497 = vsel %vm491, %v494, %v496
    %v498 = vsel %vm490, %v477, %v480
    %v499 = vsel %vm493, %v486, 920167782
    %v500 = vsel %vm492, %v483, %v499
    %v501 = vsel %vm491, %v498, %v500
    %v502 = vsel %vm490, %v480, %v483
    %v503 = vsel %vm493, %v489, 1326507024
    %v504 = vsel %vm492, %v486, %v503
    %v505 = vsel %vm491, %v502, %v504
    %v506 = vshll.u32 %v466, 8
    %v507 = vmul.u32.u64.compose %v506, %v505
    %v508 = vextract.low.u32 %v507
    %v509 = vextract.high.u32 %v507
    %v510 = vmul.u32.u64.compose %v506, %v501
    %v511 = vextract.low.u32 %v510
    %v512 = vextract.high.u32 %v510
    %v513 = vmul.u32 %v506, %v497
    %v514 = vadd.s32 %v509, %v511
    %vm515 = vc.u32 %v509, %v511
    %v516 = vadd.s32 %v512, 1
    %v517 = vsel %vm515, %v516, %v512
    %v518 = vadd.s32 %v513, %v517
    %v519 = vadd.s32 %v518, 536870912
    %v520 = vshrl.u32 %v519, 30
    %v521 = vshll.u32 %v520, 30
    %v522 = vsub.s32 %v518, %v521
    %vm523 = vcmp.lt.s32.totalorder %v522, 0
    %v524 = vsub.s32 0, %v522
    %v525 = vsel %vm523, %v524, %v522
    %v526 = vclz %v525
    %v527 = vsub.s32 %v526, 2
    %vm528 = vcmp.gt.s32.totalorder 0, %v527
    %v529 = vsel %vm528, 0, %v527
    %v530 = vsub.s32 32, %v529
    %v531 = vshll.u32 %v522, %v529
    %v532 = vshrl.u32 %v514, %v530
    %v533 = vor.u32 %v531, %v532
    %v534 = vsub.s32 4294967266, %v529
    %v535 = vadd.s32 %v534, 127
    %v536 = vshll.u32 %v535, 23
    %v537 = vor.u32 4788187, %v536
    %v538 = vand.u32 2147483647, %v537
    %v540 = vcvt.s32.f32 %v533
    %v541 = vmul.f32 %v540, %v538
    %v542 = vxor.u32 %v541, 2147483648
    %v543 = vsel %vm460, %v542, %v541
    %v544 = vsub.s32 4, %v520
    %v545 = vsel %vm460, %v544, %v520
    %v546 = vsel %vm459, %v453, %v543
    %v547 = vsel %vm459, 0, %v545
    %v548 = vcosq.f32.pop %v546
    %v549 = vsinq.f32.pop %v546
    %vm550 = vweird.f32 %v453
    %v551 = vand.u32 %v547, 3
    %vm552 = vcmp.lt.s32.totalorder %v551, 2
    %vm553 = vcmp.eq.s32.totalorder %v551, 0
    %v554 = vxor.u32 %v549, 2147483648
    %v555 = vsel %vm553, %v548, %v554
    %vm556 = vcmp.eq.s32.totalorder %v551, 2
    %v557 = vxor.u32 %v548, 2147483648
    %v558 = vsel %vm556, %v557, %v549
    %v559 = vsel %vm552, %v555, %v558
    %v560 = vsel %vm550, nan, %v559
    %v561 = vand.u32 2147483647, %v454
    %vm562 = vcmp.le.f32.partialorder %v561, 0.7853982
    %vm563 = vcmp.lt.s32.totalorder %v454, 0
    %v564 = vand.u32 %v454, 2139095040
    %v565 = vshrl.u32 %v564, 23
    %v566 = vsub.s32 %v565, 127
    %v567 = vand.u32 2147483647, %v454
    %v568 = vand.u32 %v567, 8388607
    %v569 = vor.u32 %v568, 8388608
    %v570 = vsub.s32 0, %v569
    %v571 = vadd.s32 %v566, 1
    %vm572 = vcmp.gt.s32.totalorder %v571, 0
    %v573 = vsel %vm572, %v571, 0
    %v574 = vshrl.u32 %v573, 5
    %v575 = vand.u32 %v573, 31
    %v576 = vsub.s32 32, %v575
    %v577 = vshrl.u32 683565275, %v576
    %v578 = vshll.u32 683565275, %v575
    %v579 = vshrl.u32 2475754826, %v576
    %v580 = vor.u32 %v578, %v579
    %v581 = vshll.u32 2475754826, %v575
    %v582 = vshrl.u32 2131351028, %v576
    %v583 = vor.u32 %v581, %v582
    %v584 = vshll.u32 2131351028, %v575
    %v585 = vshrl.u32 2102212464, %v576
    %v586 = vor.u32 %v584, %v585
    %v587 = vshll.u32 2102212464, %v575
    %v588 = vshrl.u32 920167782, %v576
    %v589 = vor.u32 %v587, %v588
    %v590 = vshll.u32 920167782, %v575
    %v591 = vshrl.u32 1326507024, %v576
    %v592 = vor.u32 %v590, %v591
    %vm593 = vcmp.lt.s32.totalorder %v574, 1
    %vm594 = vcmp.lt.s32.totalorder %v574, 2
    %vm595 = vcmp.lt.s32.totalorder %v574, 3
    %vm596 = vcmp.lt.s32.totalorder %v574, 4
    %v597 = vsel %vm593, %v577, %v580
    %v598 = vsel %vm596, %v586, 2102212464
    %v599 = vsel %vm595, %v583, %v598
    %v600 = vsel %vm594, %v597, %v599
    %v601 = vsel %vm593, %v580, %v583
    %v602 = vsel %vm596, %v589, 920167782
    %v603 = vsel %vm595, %v586, %v602
    %v604 = vsel %vm594, %v601, %v603
    %v605 = vsel %vm593, %v583, %v586
    %v606 = vsel %vm596, %v592, 1326507024
    %v607 = vsel %vm595, %v589, %v606
    %v608 = vsel %vm594, %v605, %v607
    %v609 = vshll.u32 %v569, 8
    %v610 = vmul.u32.u64.compose %v609, %v608
    %v611 = vextract.low.u32 %v610
    %v612 = vextract.high.u32 %v610
    %v613 = vmul.u32.u64.compose %v609, %v604
    %v614 = vextract.low.u32 %v613
    %v615 = vextract.high.u32 %v613
    %v616 = vmul.u32 %v609, %v600
    %v617 = vadd.s32 %v612, %v614
    %vm618 = vc.u32 %v612, %v614
    %v619 = vadd.s32 %v615, 1
    %v620 = vsel %vm618, %v619, %v615
    %v621 = vadd.s32 %v616, %v620
    %v622 = vadd.s32 %v621, 536870912
    %v623 = vshrl.u32 %v622, 30
    %v624 = vshll.u32 %v623, 30
    %v625 = vsub.s32 %v621, %v624
    %vm626 = vcmp.lt.s32.totalorder %v625, 0
    %v627 = vsub.s32 0, %v625
    %v628 = vsel %vm626, %v627, %v625
    %v629 = vclz %v628
    %v630 = vsub.s32 %v629, 2
    %vm631 = vcmp.gt.s32.totalorder 0, %v630
    %v632 = vsel %vm631, 0, %v630
    %v633 = vsub.s32 32, %v632
    %v634 = vshll.u32 %v625, %v632
    %v635 = vshrl.u32 %v617, %v633
    %v636 = vor.u32 %v634, %v635
    %v637 = vsub.s32 4294967266, %v632
    %v638 = vadd.s32 %v637, 127
    %v639 = vshll.u32 %v638, 23
    %v640 = vor.u32 4788187, %v639
    %v641 = vand.u32 2147483647, %v640
    %v643 = vcvt.s32.f32 %v636
    %v644 = vmul.f32 %v643, %v641
    %v645 = vxor.u32 %v644, 2147483648
    %v646 = vsel %vm563, %v645, %v644
    %v647 = vsub.s32 4, %v623
    %v648 = vsel %vm563, %v647, %v623
    %v649 = vsel %vm562, %v454, %v646
    %v650 = vsel %vm562, 0, %v648
    %v651 = vcosq.f32.pop %v649
    %v652 = vsinq.f32.pop %v649
    %vm653 = vweird.f32 %v454
    %v654 = vand.u32 %v650, 3
    %vm655 = vcmp.lt.s32.totalorder %v654, 2
    %vm656 = vcmp.eq.s32.totalorder %v654, 0
    %v657 = vxor.u32 %v652, 2147483648
    %v658 = vsel %vm656, %v651, %v657
    %vm659 = vcmp.eq.s32.totalorder %v654, 2
    %v660 = vxor.u32 %v651, 2147483648
    %v661 = vsel %vm659, %v660, %v652
    %v662 = vsel %vm655, %v658, %v661
    %v663 = vsel %vm653, nan, %v662
    %v664 = vand.u32 2147483647, %v453
    %vm665 = vcmp.le.f32.partialorder %v664, 0.7853982
    %vm666 = vcmp.lt.s32.totalorder %v453, 0
    %v667 = vand.u32 %v453, 2139095040
    %v668 = vshrl.u32 %v667, 23
    %v669 = vsub.s32 %v668, 127
    %v670 = vand.u32 2147483647, %v453
    %v671 = vand.u32 %v670, 8388607
    %v672 = vor.u32 %v671, 8388608
    %v673 = vsub.s32 0, %v672
    %v674 = vadd.s32 %v669, 1
    %vm675 = vcmp.gt.s32.totalorder %v674, 0
    %v676 = vsel %vm675, %v674, 0
    %v677 = vshrl.u32 %v676, 5
    %v678 = vand.u32 %v676, 31
    %v679 = vsub.s32 32, %v678
    %v680 = vshrl.u32 683565275, %v679
    %v681 = vshll.u32 683565275, %v678
    %v682 = vshrl.u32 2475754826, %v679
    %v683 = vor.u32 %v681, %v682
    %v684 = vshll.u32 2475754826, %v678
    %v685 = vshrl.u32 2131351028, %v679
    %v686 = vor.u32 %v684, %v685
    %v687 = vshll.u32 2131351028, %v678
    %v688 = vshrl.u32 2102212464, %v679
    %v689 = vor.u32 %v687, %v688
    %v690 = vshll.u32 2102212464, %v678
    %v691 = vshrl.u32 920167782, %v679
    %v692 = vor.u32 %v690, %v691
    %v693 = vshll.u32 920167782, %v678
    %v694 = vshrl.u32 1326507024, %v679
    %v695 = vor.u32 %v693, %v694
    %vm696 = vcmp.lt.s32.totalorder %v677, 1
    %vm697 = vcmp.lt.s32.totalorder %v677, 2
    %vm698 = vcmp.lt.s32.totalorder %v677, 3
    %vm699 = vcmp.lt.s32.totalorder %v677, 4
    %v700 = vsel %vm696, %v680, %v683
    %v701 = vsel %vm699, %v689, 2102212464
    %v702 = vsel %vm698, %v686, %v701
    %v703 = vsel %vm697, %v700, %v702
    %v704 = vsel %vm696, %v683, %v686
    %v705 = vsel %vm699, %v692, 920167782
    %v706 = vsel %vm698, %v689, %v705
    %v707 = vsel %vm697, %v704, %v706
    %v708 = vsel %vm696, %v686, %v689
    %v709 = vsel %vm699, %v695, 1326507024
    %v710 = vsel %vm698, %v692, %v709
    %v711 = vsel %vm697, %v708, %v710
    %v712 = vshll.u32 %v672, 8
    %v713 = vmul.u32.u64.compose %v712, %v711
    %v714 = vextract.low.u32 %v713
    %v715 = vextract.high.u32 %v713
    %v716 = vmul.u32.u64.compose %v712, %v707
    %v717 = vextract.low.u32 %v716
    %v718 = vextract.high.u32 %v716
    %v719 = vmul.u32 %v712, %v703
    %v720 = vadd.s32 %v715, %v717
    %vm721 = vc.u32 %v715, %v717
    %v722 = vadd.s32 %v718, 1
    %v723 = vsel %vm721, %v722, %v718
    %v724 = vadd.s32 %v719, %v723
    %v725 = vadd.s32 %v724, 536870912
    %v726 = vshrl.u32 %v725, 30
    %v727 = vshll.u32 %v726, 30
    %v728 = vsub.s32 %v724, %v727
    %vm729 = vcmp.lt.s32.totalorder %v728, 0
    %v730 = vsub.s32 0, %v728
    %v731 = vsel %vm729, %v730, %v728
    %v732 = vclz %v731
    %v733 = vsub.s32 %v732, 2
    %vm734 = vcmp.gt.s32.totalorder 0, %v733
    %v735 = vsel %vm734, 0, %v733
    %v736 = vsub.s32 32, %v735
    %v737 = vshll.u32 %v728, %v735
    %v738 = vshrl.u32 %v720, %v736
    %v739 = vor.u32 %v737, %v738
    %v740 = vsub.s32 4294967266, %v735
    %v741 = vadd.s32 %v740, 127
    %v742 = vshll.u32 %v741, 23
    %v743 = vor.u32 4788187, %v742
    %v744 = vand.u32 2147483647, %v743
    %v746 = vcvt.s32.f32 %v739
    %v747 = vmul.f32 %v746, %v744
    %v748 = vxor.u32 %v747, 2147483648
    %v749 = vsel %vm666, %v748, %v747
    %v750 = vsub.s32 4, %v726
    %v751 = vsel %vm666, %v750, %v726
    %v752 = vsel %vm665, %v453, %v749
    %v753 = vsel %vm665, 0, %v751
    %v754 = vcosq.f32.pop %v752
    %v755 = vsinq.f32.pop %v752
    %vm756 = vweird.f32 %v453
    %v757 = vadd.s32 %v753, 3
    %v758 = vand.u32 %v757, 3
    %vm759 = vcmp.lt.s32.totalorder %v758, 2
    %vm760 = vcmp.eq.s32.totalorder %v758, 0
    %v761 = vxor.u32 %v755, 2147483648
    %v762 = vsel %vm760, %v754, %v761
    %vm763 = vcmp.eq.s32.totalorder %v758, 2
    %v764 = vxor.u32 %v754, 2147483648
    %v765 = vsel %vm763, %v764, %v755
    %v766 = vsel %vm759, %v762, %v765
    %v767 = vsel %vm756, nan, %v766
    %v768 = vand.u32 2147483647, %v454
    %vm769 = vcmp.le.f32.partialorder %v768, 0.7853982
    %vm770 = vcmp.lt.s32.totalorder %v454, 0
    %v771 = vand.u32 %v454, 2139095040
    %v772 = vshrl.u32 %v771, 23
    %v773 = vsub.s32 %v772, 127
    %v774 = vand.u32 2147483647, %v454
    %v775 = vand.u32 %v774, 8388607
    %v776 = vor.u32 %v775, 8388608
    %v777 = vsub.s32 0, %v776
    %v778 = vadd.s32 %v773, 1
    %vm779 = vcmp.gt.s32.totalorder %v778, 0
    %v780 = vsel %vm779, %v778, 0
    %v781 = vshrl.u32 %v780, 5
    %v782 = vand.u32 %v780, 31
    %v783 = vsub.s32 32, %v782
    %v784 = vshrl.u32 683565275, %v783
    %v785 = vshll.u32 683565275, %v782
    %v786 = vshrl.u32 2475754826, %v783
    %v787 = vor.u32 %v785, %v786
    %v788 = vshll.u32 2475754826, %v782
    %v789 = vshrl.u32 2131351028, %v783
    %v790 = vor.u32 %v788, %v789
    %v791 = vshll.u32 2131351028, %v782
    %v792 = vshrl.u32 2102212464, %v783
    %v793 = vor.u32 %v791, %v792
    %v794 = vshll.u32 2102212464, %v782
    %v795 = vshrl.u32 920167782, %v783
    %v796 = vor.u32 %v794, %v795
    %v797 = vshll.u32 920167782, %v782
    %v798 = vshrl.u32 1326507024, %v783
    %v799 = vor.u32 %v797, %v798
    %vm800 = vcmp.lt.s32.totalorder %v781, 1
    %vm801 = vcmp.lt.s32.totalorder %v781, 2
    %vm802 = vcmp.lt.s32.totalorder %v781, 3
    %vm803 = vcmp.lt.s32.totalorder %v781, 4
    %v804 = vsel %vm800, %v784, %v787
    %v805 = vsel %vm803, %v793, 2102212464
    %v806 = vsel %vm802, %v790, %v805
    %v807 = vsel %vm801, %v804, %v806
    %v808 = vsel %vm800, %v787, %v790
    %v809 = vsel %vm803, %v796, 920167782
    %v810 = vsel %vm802, %v793, %v809
    %v811 = vsel %vm801, %v808, %v810
    %v812 = vsel %vm800, %v790, %v793
    %v813 = vsel %vm803, %v799, 1326507024
    %v814 = vsel %vm802, %v796, %v813
    %v815 = vsel %vm801, %v812, %v814
    %v816 = vshll.u32 %v776, 8
    %v817 = vmul.u32.u64.compose %v816, %v815
    %v818 = vextract.low.u32 %v817
    %v819 = vextract.high.u32 %v817
    %v820 = vmul.u32.u64.compose %v816, %v811
    %v821 = vextract.low.u32 %v820
    %v822 = vextract.high.u32 %v820
    %v823 = vmul.u32 %v816, %v807
    %v824 = vadd.s32 %v819, %v821
    %vm825 = vc.u32 %v819, %v821
    %v826 = vadd.s32 %v822, 1
    %v827 = vsel %vm825, %v826, %v822
    %v828 = vadd.s32 %v823, %v827
    %v829 = vadd.s32 %v828, 536870912
    %v830 = vshrl.u32 %v829, 30
    %v831 = vshll.u32 %v830, 30
    %v832 = vsub.s32 %v828, %v831
    %vm833 = vcmp.lt.s32.totalorder %v832, 0
    %v834 = vsub.s32 0, %v832
    %v835 = vsel %vm833, %v834, %v832
    %v836 = vclz %v835
    %v837 = vsub.s32 %v836, 2
    %vm838 = vcmp.gt.s32.totalorder 0, %v837
    %v839 = vsel %vm838, 0, %v837
    %v840 = vsub.s32 32, %v839
    %v841 = vshll.u32 %v832, %v839
    %v842 = vshrl.u32 %v824, %v840
    %v843 = vor.u32 %v841, %v842
    %v844 = vsub.s32 4294967266, %v839
    %v845 = vadd.s32 %v844, 127
    %v846 = vshll.u32 %v845, 23
    %v847 = vor.u32 4788187, %v846
    %v848 = vand.u32 2147483647, %v847
    %v850 = vcvt.s32.f32 %v843
    %v851 = vmul.f32 %v850, %v848
    %v852 = vxor.u32 %v851, 2147483648
    %v853 = vsel %vm770, %v852, %v851
    %v854 = vsub.s32 4, %v830
    %v855 = vsel %vm770, %v854, %v830
    %v856 = vsel %vm769, %v454, %v853
    %v857 = vsel %vm769, 0, %v855
    %v858 = vcosq.f32.pop %v856
    %v859 = vsinq.f32.pop %v856
    %vm860 = vweird.f32 %v454
    %v861 = vadd.s32 %v857, 3
    %v862 = vand.u32 %v861, 3
    %vm863 = vcmp.lt.s32.totalorder %v862, 2
    %vm864 = vcmp.eq.s32.totalorder %v862, 0
    %v865 = vxor.u32 %v859, 2147483648
    %v866 = vsel %vm864, %v858, %v865
    %vm867 = vcmp.eq.s32.totalorder %v862, 2
    %v868 = vxor.u32 %v858, 2147483648
    %v869 = vsel %vm867, %v868, %v859
    %v870 = vsel %vm863, %v866, %v869
    %v871 = vsel %vm860, nan, %v870
    %v872 = vsel %vm457, %v560, %v767
    %v873 = vsel %vm457, %v663, %v871
    %874 = vst [vmem:[#allocation10] sm:$0xff] %v872
    %875 = vst [vmem:[#allocation10 + $0x8] sm:$0xff] %v873
    // Predicated region
    $region46: #{tpu_custom_call.1} parent=1 // pred_check
      _
    $region47: #{tpu_custom_call.1} parent=1 // pred_check_branch
      %877 = sbr.rel (0) target = $region49
    $region48: #{tpu_custom_call.1} parent=1 // pred_region
      %s879 = ssub.s32 256, 256
      %880 = vsyncadd [#allocation4], %s879
      %s881 = sshll.u32 [#allocation10], 4
      %s882 = int_to_ptr.vmem [resolvable:$true] %s881
      %887 = dma.vmem_to_hbm [thread:$0]  %s882, 256, %s7, [#allocation4], 128, 128, 8
    $region49: #{tpu_custom_call.1} parent=1 // pred_fallthru
      _
    // Predicated region
    $region50: #{tpu_custom_call.1} parent=1 // pred_check
      _
    $region51: #{tpu_custom_call.1} parent=1 // pred_check_branch
      %889 = sbr.rel (0) target = $region53
    $region52: #{tpu_custom_call.1} parent=1 // pred_region
      %890 = dma.done [#allocation4], 256
    $region53: #{tpu_custom_call.1} parent=1 // pred_fallthru
      _
    %891 = vsyncpa [#allocation3], 1
    %892 = vsyncpa [#allocation6], 1
    %893 = vsyncpa [#allocation9], 1
    %894 = vsyncpa [#allocation4], 1

</llo_original>
